<compile_context>
chip_gen: v7x
topology: tpu7x:2x2x1
jax: 0.10.0
libtpu: 0.0.40
codegen_flags: <defaults>
</compile_context>

<pallas_src>
import jax
import jax.numpy as jnp
import numpy as np
from jax import lax
from jax.experimental import pallas as pl
from jax.experimental.pallas import tpu as pltpu

# ----------------------- small, MiniMind-consistent config -------------------
HIDDEN = 64            # config.hidden_size (small for the demo)
INTER = 128            # config.intermediate_size (multiple of 64)
N_ROUTED = 4           # config.n_routed_experts
N_SHARED = 1           # config.n_shared_experts
TOP_K = 2              # config.num_experts_per_tok
E_TOTAL = N_ROUTED + N_SHARED
EI = E_TOTAL * INTER   # 640 (all slice boundaries 128-aligned)
BSZ, SEQ = 2, 8
T = BSZ * SEQ          # 16 tokens (multiple of 8 -> sublane friendly)


# ------------------------------ fused MoE kernel ------------------------------
def moe_ffn_kernel(x_ref, wgate_ref, wgu_ref, wd_ref, o_ref):
    """Fused gate + all experts (two wide matmuls) for one token tile.

    x_ref:     (TM, H)          f32
    wgate_ref: (H, N_ROUTED)    f32   canonical (K, N) layout (exact routing)
    wgu_ref:   (H, 2*E*I)       bf16  [all gate_proj | all up_proj], (K, N)
    wd_ref:    (E*I, H)         bf16  all down_proj stacked along K
    o_ref:     (TM, H)          f32
    """
    x_f32 = x_ref[...].astype(jnp.float32)                      # (TM, H)

    # ---- gate: softmax -> top-k -> normalized combine weights (exact f32) ----
    logits = jnp.dot(x_f32, wgate_ref[...],
                     preferred_element_type=jnp.float32)        # (TM, NR)
    scores = jax.nn.softmax(logits, axis=-1)

    eidx = lax.broadcasted_iota(jnp.int32, scores.shape, 1)
    work = scores
    sel = jnp.zeros(scores.shape, dtype=jnp.bool_)
    for _ in range(TOP_K):                                      # k tiny & static
        m = jnp.max(work, axis=-1, keepdims=True)
        is_max = work >= m
        # break ties by lowest index (matches torch.topk / lax.top_k)
        masked_idx = jnp.where(is_max, eidx, N_ROUTED)
        first = eidx == jnp.min(masked_idx, axis=-1, keepdims=True)
        sel = sel | first
        work = jnp.where(first, -jnp.inf, work)

    topk_w = jnp.where(sel, scores, 0.0)
    denom = jnp.sum(topk_w, axis=-1, keepdims=True) + 1e-20
    comb = topk_w * pl.reciprocal(denom, approx=True)           # (TM, NR)

    # ---- one wide gate|up matmul over ALL experts (K=H, N=2*E*I=1280) ----
    x_bf = x_f32.astype(jnp.bfloat16)
    gu = jnp.dot(x_bf, wgu_ref[...],
                 preferred_element_type=jnp.float32)            # (TM, 2*E*I)
    g = gu[:, :EI]                                              # all gates
    u = gu[:, EI:]                                              # all ups
    h = jax.nn.silu(g) * u                                      # (TM, E*I) f32

    # ---- fold routed combine weights into h; shared expert keeps weight 1.0 --
    blocks = [h[:, e * INTER:(e + 1) * INTER] * comb[:, e:e + 1]
              for e in range(N_ROUTED)]
    blocks.append(h[:, N_ROUTED * INTER:])                      # shared expert(s)
    h_scaled = jnp.concatenate(blocks, axis=1)                  # (TM, E*I)

    # ---- one stacked down-projection (K=E*I=640); expert sum in MXU f32 acc --
    y = jnp.dot(h_scaled.astype(jnp.bfloat16), wd_ref[...],
                preferred_element_type=jnp.float32)             # (TM, H)

    # NOTE: H = 64 < 128 -> partially masked stores at demo size; production
    # hidden sizes are multiples of 128 and stores become lane-dense.
    o_ref[...] = y.astype(o_ref.dtype)


# --------------------------------- wrapper ------------------------------------
def prepare_weights(w_gate, wg_all, wu_all, wd_all):
    """One-time host-side repack into kernel layout.

    w_gate: (NR, H)        -> (H, NR) f32                   (exact routing)
    wg/wu:  (E, I, H) each -> (H, E*I) stacked along N, order [gates | ups], bf16
    wd:     (E, H, I)      -> (E*I, H) stacked along K, bf16
    """
    w_gate_t = jnp.asarray(w_gate, jnp.float32).T                        # (H, NR)
    g_all = jnp.transpose(wg_all, (2, 0, 1)).reshape(HIDDEN, EI)         # (H, E*I)
    u_all = jnp.transpose(wu_all, (2, 0, 1)).reshape(HIDDEN, EI)         # (H, E*I)
    wgu = jnp.concatenate([g_all, u_all], axis=1).astype(jnp.bfloat16)   # (H, 2*E*I)
    wd_stack = jnp.transpose(wd_all, (0, 2, 1)).reshape(EI, HIDDEN)
    wd_stack = wd_stack.astype(jnp.bfloat16)                             # (E*I, H)
    return w_gate_t, wgu, wd_stack


@jax.jit
def moe_feed_forward(x, w_gate_t, wgu, wd_stack):
    bsz, seq, hdim = x.shape
    x_flat = x.reshape(-1, hdim).astype(jnp.float32)
    t = x_flat.shape[0]

    # Single token tile at demo size.  At realistic T pick tm ~ 256 (v6e/v7x)
    # or 128 (v5e) so this "parallel" axis has multiple steps (v7x: 2 TCs).
    tm = t
    n_tiles = t // tm

    y_flat = pl.pallas_call(
        moe_ffn_kernel,
        out_shape=jax.ShapeDtypeStruct((t, hdim), jnp.float32),
        grid_spec=pltpu.PrefetchScalarGridSpec(
            num_scalar_prefetch=0,
            grid=(n_tiles,),
            in_specs=[
                pl.BlockSpec((tm, hdim), lambda i: (i, 0)),        # x tile
                pl.BlockSpec(w_gate_t.shape, lambda i: (0, 0)),    # gate W (f32)
                pl.BlockSpec(wgu.shape, lambda i: (0, 0)),         # gate|up (bf16)
                pl.BlockSpec(wd_stack.shape, lambda i: (0, 0)),    # down stack
            ],
            out_specs=pl.BlockSpec((tm, hdim), lambda i: (i, 0)),
        ),
        compiler_params=pltpu.CompilerParams(
            dimension_semantics=("parallel",),
            vmem_limit_bytes=32 * 1024 * 1024),
    )(x_flat, w_gate_t, wgu, wd_stack)

    return y_flat.reshape(bsz, seq, hdim)


# ----------------------------- pure-JAX reference ----------------------------
def _ffn_ref(x, wg, wu, wd):
    return (jax.nn.silu(x @ wg.T) * (x @ wu.T)) @ wd.T


def moe_reference(x, w_gate, wg_all, wu_all, wd_all):
    bsz, seq, h = x.shape
    xf = x.reshape(-1, h)
    scores = jax.nn.softmax(xf @ w_gate.T, axis=-1)
    tw, ti = jax.lax.top_k(scores, TOP_K)
    tw = tw / (tw.sum(-1, keepdims=True) + 1e-20)
    y = jnp.zeros_like(xf)
    for e in range(N_ROUTED):
        we = jnp.sum(jnp.where(ti == e, tw, 0.0), axis=-1, keepdims=True)
        y = y + we * _ffn_ref(xf, wg_all[e], wu_all[e], wd_all[e])
    for s in range(N_SHARED):
        e = N_ROUTED + s
        y = y + _ffn_ref(xf, wg_all[e], wu_all[e], wd_all[e])
    return y.reshape(bsz, seq, h)


# ----------------------------------- main -------------------------------------
if __name__ == "__main__":
    key = jax.random.PRNGKey(0)
    k_x, k_g, k_wg, k_wu, k_wd = jax.random.split(key, 5)

    x = jax.random.normal(k_x, (BSZ, SEQ, HIDDEN), dtype=jnp.float32)

    # deterministic synthetic parameters (PyTorch (out, in) layout, f32 "model")
    w_gate = jax.random.normal(k_g, (N_ROUTED, HIDDEN), jnp.float32) * 0.05
    wg_all = jax.random.normal(k_wg, (E_TOTAL, INTER, HIDDEN), jnp.float32) * 0.05
    wu_all = jax.random.normal(k_wu, (E_TOTAL, INTER, HIDDEN), jnp.float32) * 0.05
    wd_all = jax.random.normal(k_wd, (E_TOTAL, HIDDEN, INTER), jnp.float32) * 0.05

    # one-time repack into kernel layout (gate f32, experts bf16, stacked (K,N))
    w_gate_t, wgu, wd_stack = prepare_weights(w_gate, wg_all, wu_all, wd_all)

    out = moe_feed_forward(x, w_gate_t, wgu, wd_stack)
    out = jax.block_until_ready(out)

    ref = moe_reference(x, w_gate, wg_all, wu_all, wd_all)
    # tolerance loosened vs pure-f32 because expert weights/activations feed the
    # MXU in bf16 (f32 accumulation); routing itself is exact f32.
    np.testing.assert_allclose(np.asarray(out), np.asarray(ref),
                               rtol=2e-2, atol=2e-2)

    print("KERNEL_OK")
</pallas_src>

<mosaic_0001>
module attributes {stable_mosaic.version = 11 : i64} {
  func.func @moe_ffn_kernel(%arg0: i32, %arg1: memref<16x64xf32, #tpu.memory_space<vmem>>, %arg2: memref<64x4xf32, #tpu.memory_space<vmem>>, %arg3: memref<64x1280xbf16, #tpu.memory_space<vmem>>, %arg4: memref<640x64xbf16, #tpu.memory_space<vmem>>, %arg5: memref<16x64xf32, #tpu.memory_space<vmem>>) attributes {dimension_semantics = [#tpu.dimension_semantics<parallel>], iteration_bounds = array<i64: 1>, scalar_prefetch = 0 : i64, scratch_operands = 0 : i64, tpu.core_type = #tpu.core_type<tc>, window_params = [{transform_indices = @transform_0, window_bounds = array<i64: 16, 64>}, {pipeline_mode = #tpu.pipeline_mode<synchronous>, transform_indices = @transform_1, window_bounds = array<i64: 64, 4>}, {pipeline_mode = #tpu.pipeline_mode<synchronous>, transform_indices = @transform_2, window_bounds = array<i64: 64, 1280>}, {pipeline_mode = #tpu.pipeline_mode<synchronous>, transform_indices = @transform_3, window_bounds = array<i64: 640, 64>}, {transform_indices = @transform_4, window_bounds = array<i64: 16, 64>}]} {
    %c0 = arith.constant 0 : index
    %c0_0 = arith.constant 0 : index
    %0 = vector.load %arg1[%c0, %c0_0] : memref<16x64xf32, #tpu.memory_space<vmem>>, vector<16x64xf32>
    %c0_1 = arith.constant 0 : index
    %c0_2 = arith.constant 0 : index
    %1 = vector.load %arg2[%c0_1, %c0_2] : memref<64x4xf32, #tpu.memory_space<vmem>>, vector<64x4xf32>
    %cst = arith.constant dense<0.000000e+00> : vector<16x4xf32>
    %2 = tpu.matmul %0, %1, %cst {dimension_numbers = #tpu.dot_dimension_numbers<[1], [0], [0], [1], [0, 0, 1, 1], [], []>} : vector<16x64xf32>, vector<64x4xf32>, vector<16x4xf32> -> vector<16x4xf32>
    %cst_3 = arith.constant dense<0xFF800000> : vector<16xf32>
    %3 = vector.multi_reduction <maximumf>, %2, %cst_3 [1] : vector<16x4xf32> to vector<16xf32>
    %cst_4 = arith.constant 0xFF800000 : f32
    %4 = vector.broadcast %cst_4 : f32 to vector<16xf32>
    %5 = arith.maximumf %4, %3 : vector<16xf32>
    %6 = vector.shape_cast %5 : vector<16xf32> to vector<16x1xf32>
    %7 = vector.broadcast %6 : vector<16x1xf32> to vector<16x4xf32>
    %8 = arith.subf %2, %7 : vector<16x4xf32>
    %9 = math.exp %8 : vector<16x4xf32>
    %cst_5 = arith.constant dense<0.000000e+00> : vector<16xf32>
    %10 = vector.multi_reduction <add>, %9, %cst_5 [1] : vector<16x4xf32> to vector<16xf32>
    %11 = vector.shape_cast %10 : vector<16xf32> to vector<16x1xf32>
    %12 = vector.broadcast %11 : vector<16x1xf32> to vector<16x4xf32>
    %13 = arith.divf %9, %12 : vector<16x4xf32>
    %14 = tpu.iota {dimensions = array<i32: 1>} : vector<16x4xi32>
    %false = arith.constant false
    %15 = vector.broadcast %false : i1 to vector<16x4xi1>
    %cst_6 = arith.constant dense<0xFF800000> : vector<16xf32>
    %16 = vector.multi_reduction <maximumf>, %13, %cst_6 [1] : vector<16x4xf32> to vector<16xf32>
    %17 = vector.shape_cast %16 : vector<16xf32> to vector<16x1xf32>
    %18 = vector.broadcast %17 : vector<16x1xf32> to vector<16x4xf32>
    %19 = arith.cmpf oge, %13, %18 : vector<16x4xf32>
    %c4_i32 = arith.constant 4 : i32
    %20 = vector.broadcast %c4_i32 : i32 to vector<16x4xi32>
    %21 = arith.select %19, %14, %20 : vector<16x4xi1>, vector<16x4xi32>
    %cst_7 = arith.constant dense<2147483647> : vector<16xi32>
    %22 = vector.multi_reduction <minsi>, %21, %cst_7 [1] : vector<16x4xi32> to vector<16xi32>
    %23 = vector.shape_cast %22 : vector<16xi32> to vector<16x1xi32>
    %24 = vector.broadcast %23 : vector<16x1xi32> to vector<16x4xi32>
    %25 = arith.cmpi eq, %14, %24 : vector<16x4xi32>
    %26 = arith.ori %15, %25 : vector<16x4xi1>
    %cst_8 = arith.constant 0xFF800000 : f32
    %27 = vector.broadcast %cst_8 : f32 to vector<16x4xf32>
    %28 = arith.select %25, %27, %13 : vector<16x4xi1>, vector<16x4xf32>
    %cst_9 = arith.constant dense<0xFF800000> : vector<16xf32>
    %29 = vector.multi_reduction <maximumf>, %28, %cst_9 [1] : vector<16x4xf32> to vector<16xf32>
    %30 = vector.shape_cast %29 : vector<16xf32> to vector<16x1xf32>
    %31 = vector.broadcast %30 : vector<16x1xf32> to vector<16x4xf32>
    %32 = arith.cmpf oge, %28, %31 : vector<16x4xf32>
    %c4_i32_10 = arith.constant 4 : i32
    %33 = vector.broadcast %c4_i32_10 : i32 to vector<16x4xi32>
    %34 = arith.select %32, %14, %33 : vector<16x4xi1>, vector<16x4xi32>
    %cst_11 = arith.constant dense<2147483647> : vector<16xi32>
    %35 = vector.multi_reduction <minsi>, %34, %cst_11 [1] : vector<16x4xi32> to vector<16xi32>
    %36 = vector.shape_cast %35 : vector<16xi32> to vector<16x1xi32>
    %37 = vector.broadcast %36 : vector<16x1xi32> to vector<16x4xi32>
    %38 = arith.cmpi eq, %14, %37 : vector<16x4xi32>
    %39 = arith.ori %26, %38 : vector<16x4xi1>
    %cst_12 = arith.constant 0.000000e+00 : f32
    %40 = vector.broadcast %cst_12 : f32 to vector<16x4xf32>
    %41 = arith.select %39, %13, %40 : vector<16x4xi1>, vector<16x4xf32>
    %cst_13 = arith.constant dense<0.000000e+00> : vector<16xf32>
    %42 = vector.multi_reduction <add>, %41, %cst_13 [1] : vector<16x4xf32> to vector<16xf32>
    %43 = vector.shape_cast %42 : vector<16xf32> to vector<16x1xf32>
    %cst_14 = arith.constant 9.99999968E-21 : f32
    %44 = vector.broadcast %cst_14 : f32 to vector<16x1xf32>
    %45 = arith.addf %43, %44 : vector<16x1xf32>
    %46 = tpu.reciprocal %45 {approx = true} : vector<16x1xf32> -> vector<16x1xf32>
    %47 = vector.broadcast %46 : vector<16x1xf32> to vector<16x4xf32>
    %48 = arith.mulf %41, %47 : vector<16x4xf32>
    %49 = arith.truncf %0 : vector<16x64xf32> to vector<16x64xbf16>
    %c0_15 = arith.constant 0 : index
    %c0_16 = arith.constant 0 : index
    %50 = vector.load %arg3[%c0_15, %c0_16] : memref<64x1280xbf16, #tpu.memory_space<vmem>>, vector<64x1280xbf16>
    %cst_17 = arith.constant dense<0.000000e+00> : vector<16x1280xf32>
    %51 = tpu.matmul %49, %50, %cst_17 {dimension_numbers = #tpu.dot_dimension_numbers<[1], [0], [0], [1], [0, 0, 1, 1], [], []>} : vector<16x64xbf16>, vector<64x1280xbf16>, vector<16x1280xf32> -> vector<16x1280xf32>
    %52 = vector.extract_strided_slice %51 {offsets = [0, 0], sizes = [16, 640], strides = [1, 1]} : vector<16x1280xf32> to vector<16x640xf32>
    %53 = vector.extract_strided_slice %51 {offsets = [0, 640], sizes = [16, 640], strides = [1, 1]} : vector<16x1280xf32> to vector<16x640xf32>
    %54 = arith.negf %52 : vector<16x640xf32>
    %55 = math.exp %54 : vector<16x640xf32>
    %cst_18 = arith.constant 1.000000e+00 : f32
    %56 = vector.broadcast %cst_18 : f32 to vector<16x640xf32>
    %57 = arith.addf %56, %55 : vector<16x640xf32>
    %58 = arith.divf %56, %57 : vector<16x640xf32>
    %59 = arith.mulf %52, %58 : vector<16x640xf32>
    %60 = arith.mulf %59, %53 : vector<16x640xf32>
    %61 = vector.extract_strided_slice %60 {offsets = [0, 0], sizes = [16, 128], strides = [1, 1]} : vector<16x640xf32> to vector<16x128xf32>
    %62 = vector.extract_strided_slice %48 {offsets = [0, 0], sizes = [16, 1], strides = [1, 1]} : vector<16x4xf32> to vector<16x1xf32>
    %63 = vector.broadcast %62 : vector<16x1xf32> to vector<16x128xf32>
    %64 = arith.mulf %61, %63 : vector<16x128xf32>
    %65 = vector.extract_strided_slice %60 {offsets = [0, 128], sizes = [16, 128], strides = [1, 1]} : vector<16x640xf32> to vector<16x128xf32>
    %66 = vector.extract_strided_slice %48 {offsets = [0, 1], sizes = [16, 1], strides = [1, 1]} : vector<16x4xf32> to vector<16x1xf32>
    %67 = vector.broadcast %66 : vector<16x1xf32> to vector<16x128xf32>
    %68 = arith.mulf %65, %67 : vector<16x128xf32>
    %69 = vector.extract_strided_slice %60 {offsets = [0, 256], sizes = [16, 128], strides = [1, 1]} : vector<16x640xf32> to vector<16x128xf32>
    %70 = vector.extract_strided_slice %48 {offsets = [0, 2], sizes = [16, 1], strides = [1, 1]} : vector<16x4xf32> to vector<16x1xf32>
    %71 = vector.broadcast %70 : vector<16x1xf32> to vector<16x128xf32>
    %72 = arith.mulf %69, %71 : vector<16x128xf32>
    %73 = vector.extract_strided_slice %60 {offsets = [0, 384], sizes = [16, 128], strides = [1, 1]} : vector<16x640xf32> to vector<16x128xf32>
    %74 = vector.extract_strided_slice %48 {offsets = [0, 3], sizes = [16, 1], strides = [1, 1]} : vector<16x4xf32> to vector<16x1xf32>
    %75 = vector.broadcast %74 : vector<16x1xf32> to vector<16x128xf32>
    %76 = arith.mulf %73, %75 : vector<16x128xf32>
    %77 = vector.extract_strided_slice %60 {offsets = [0, 512], sizes = [16, 128], strides = [1, 1]} : vector<16x640xf32> to vector<16x128xf32>
    %78 = tpu.concatenate %64, %68, %72, %76, %77 in 1 : vector<16x128xf32>, vector<16x128xf32>, vector<16x128xf32>, vector<16x128xf32>, vector<16x128xf32> -> vector<16x640xf32>
    %79 = arith.truncf %78 : vector<16x640xf32> to vector<16x640xbf16>
    %c0_19 = arith.constant 0 : index
    %c0_20 = arith.constant 0 : index
    %80 = vector.load %arg4[%c0_19, %c0_20] : memref<640x64xbf16, #tpu.memory_space<vmem>>, vector<640x64xbf16>
    %cst_21 = arith.constant dense<0.000000e+00> : vector<16x64xf32>
    %81 = tpu.matmul %79, %80, %cst_21 {dimension_numbers = #tpu.dot_dimension_numbers<[1], [0], [0], [1], [0, 0, 1, 1], [], []>} : vector<16x640xbf16>, vector<640x64xbf16>, vector<16x64xf32> -> vector<16x64xf32>
    %c0_22 = arith.constant 0 : index
    %c0_23 = arith.constant 0 : index
    %82 = vector.load %arg5[%c0_22, %c0_23] : memref<16x64xf32, #tpu.memory_space<vmem>>, vector<16x64xf32>
    tpu.vector_store %arg5[%c0_22, %c0_23], %81 {strides = array<i32>} : memref<16x64xf32, #tpu.memory_space<vmem>>, vector<16x64xf32>,
    return
  }
  func.func @transform_0(%arg0: i32) -> (i32, i32) {
    %c0_i32 = arith.constant 0 : i32
    %c0_i32_0 = arith.constant 0 : i32
    return %arg0, %c0_i32 : i32, i32
  }
  func.func @transform_1(%arg0: i32) -> (i32, i32) {
    %c0_i32 = arith.constant 0 : i32
    %c0_i32_0 = arith.constant 0 : i32
    %c0_i32_1 = arith.constant 0 : i32
    return %c0_i32, %c0_i32_0 : i32, i32
  }
  func.func @transform_2(%arg0: i32) -> (i32, i32) {
    %c0_i32 = arith.constant 0 : i32
    %c0_i32_0 = arith.constant 0 : i32
    %c0_i32_1 = arith.constant 0 : i32
    return %c0_i32, %c0_i32_0 : i32, i32
  }
  func.func @transform_3(%arg0: i32) -> (i32, i32) {
    %c0_i32 = arith.constant 0 : i32
    %c0_i32_0 = arith.constant 0 : i32
    %c0_i32_1 = arith.constant 0 : i32
    return %c0_i32, %c0_i32_0 : i32, i32
  }
  func.func @transform_4(%arg0: i32) -> (i32, i32) {
    %c0_i32 = arith.constant 0 : i32
    %c0_i32_0 = arith.constant 0 : i32
    return %arg0, %c0_i32 : i32, i32
  }
}

</mosaic_0001>

<llo_original>
// kernel: moe_feed_forward.1
$region0: #{moe_feed_forward.1}
  #allocation0 [shape = 'u32[]', space=smem, size = 0x4, offset = 0x4, fixed_abs, tag = 'smem constant byte address 0x4 - core index']
  #allocation1 [shape = 'u32[144,128]{1,0:T(1,128)}', space=vmem, size = 0x12000, scoped, tag = 'internal scratch']
  %s0 = inlined_call_operand.vmem [shape: f32[16,64], index: 0, kind: input, shape index: {}]
  %s1 = inlined_call_operand.vmem [shape: f32[64,4], index: 1, kind: input, shape index: {}]
  %s2 = inlined_call_operand.vmem [shape: bf16[64,1280], index: 2, kind: input, shape index: {}]
  %s3 = inlined_call_operand.vmem [shape: bf16[640,64], index: 3, kind: input, shape index: {}]
  %s4 = inlined_call_operand.hbm [shape: f32[16,64], index: 4, kind: output, shape index: {}]
  %s5 = sld [smem:[#allocation0]]
  $region26: #{moe_feed_forward.1} parent=0
    _
  %s7 = ssub.s32 1, %s5
  %s8 = scalar_select 0, %s7, %s5
  $region1: #{moe_feed_forward.1} parent=0
    #allocation2 [shape = 'u8[8192]{0}', space=vmem, size = 0x2000, scoped, tag = 'output window, operand 0, single buffered']
    #allocation3 [shape = 's32[1]{0}', space=sflag, size = 0x4, scoped, tag = 'scoped memory for moe_feed_forward.1']
    %9 = vsyncpa [#allocation3], 0
    // Predicated region
    $region2: #{moe_feed_forward.1} parent=1 // pred_check
      _
    $region3: #{moe_feed_forward.1} parent=1 // pred_check_branch
      %11 = sbr.rel (0) target = $region5
    $region4: #{moe_feed_forward.1} parent=1 // pred_region
      _
    $region5: #{moe_feed_forward.1} parent=1 // pred_fallthru
      _
    // Predicated region
    $region6: #{moe_feed_forward.1} parent=1 // pred_check
      _
    $region7: #{moe_feed_forward.1} parent=1 // pred_check_branch
      %13 = sbr.rel (0) target = $region9
    $region8: #{moe_feed_forward.1} parent=1 // pred_region
      _
    $region9: #{moe_feed_forward.1} parent=1 // pred_fallthru
      _
    // Predicated region
    $region10: #{moe_feed_forward.1} parent=1 // pred_check
      _
    $region11: #{moe_feed_forward.1} parent=1 // pred_check_branch
      %15 = sbr.rel (0) target = $region13
    $region12: #{moe_feed_forward.1} parent=1 // pred_region
      _
    $region13: #{moe_feed_forward.1} parent=1 // pred_fallthru
      _
    // Predicated region
    $region14: #{moe_feed_forward.1} parent=1 // pred_check
      _
    $region15: #{moe_feed_forward.1} parent=1 // pred_check_branch
      %17 = sbr.rel (0) target = $region17
    $region16: #{moe_feed_forward.1} parent=1 // pred_region
      _
    $region17: #{moe_feed_forward.1} parent=1 // pred_fallthru
      _
    %v19 = vld [vmem:[%s0] sm:$0xff]
    %v20 = vld [vmem:[%s0 + $0x8] sm:$0xff]
    %v21 = vld [vmem:[%s1] sm:$0xff]
    %v22 = vld [vmem:[%s1 + $0x8] sm:$0xff]
    %v23 = vld [vmem:[%s1 + $0x10] sm:$0xff]
    %v24 = vld [vmem:[%s1 + $0x18] sm:$0xff]
    %v25 = vld [vmem:[%s1 + $0x20] sm:$0xff]
    %v26 = vld [vmem:[%s1 + $0x28] sm:$0xff]
    %v27 = vld [vmem:[%s1 + $0x30] sm:$0xff]
    %v28 = vld [vmem:[%s1 + $0x38] sm:$0xff]
    %vm29 = vcmask 523264
    %v31 = vsel %vm29, %v19, 0
    %v34 = vsel %vm29, %v20, 0
    %36 = vmatprep.subr.mxu0 0.0
    %37 = vmatpush1.msra.mxu0 %v21
    %38 = vmatprep.subr.mxu0 0.0
    %39 = vmatpush1.msra.mxu0 %v22
    %40 = vmatprep.subr.mxu0 0.0
    %41 = vmatpush1.msra.mxu0 %v23
    %42 = vmatprep.subr.mxu0 0.0
    %43 = vmatpush1.msra.mxu0 %v24
    %44 = vmatprep.subr.mxu0 0.0
    %45 = vmatpush1.msra.mxu0 %v25
    %46 = vmatprep.subr.mxu0 0.0
    %47 = vmatpush1.msra.mxu0 %v26
    %48 = vmatprep.subr.mxu0 0.0
    %49 = vmatpush1.msra.mxu0 %v27
    %50 = vmatprep.subr.mxu0 0.0
    %51 = vmatpush1.msra.mxu0 %v28
    %52 = vmatprep.subr.mxu0 0.0
    %53 = vmatpush1.msra.mxu0 0.0
    %54 = vmatprep.subr.mxu0 0.0
    %55 = vmatpush1.msra.mxu0 0.0
    %56 = vmatprep.subr.mxu0 0.0
    %57 = vmatpush1.msra.mxu0 0.0
    %58 = vmatprep.subr.mxu0 0.0
    %59 = vmatpush1.msra.mxu0 0.0
    %60 = vmatprep.subr.mxu0 0.0
    %61 = vmatpush1.msra.mxu0 0.0
    %62 = vmatprep.subr.mxu0 0.0
    %63 = vmatpush1.msra.mxu0 0.0
    %64 = vmatprep.subr.mxu0 0.0
    %65 = vmatpush1.msra.mxu0 0.0
    %66 = vmatprep.subr.mxu0 0.0
    %67 = vmatpush1.msra.mxu0 0.0
    %68 = vmatprep.subr.mxu0 0.0
    %69 = vmatpush1.msra.mxu0 0.0
    %70 = vmatprep.subr.mxu0 0.0
    %71 = vmatpush1.msra.mxu0 0.0
    %72 = vmatprep.subr.mxu0 0.0
    %73 = vmatpush1.msra.mxu0 0.0
    %74 = vmatprep.subr.mxu0 0.0
    %75 = vmatpush1.msra.mxu0 0.0
    %76 = vmatprep.subr.mxu0 0.0
    %77 = vmatpush1.msra.mxu0 0.0
    %78 = vmatprep.subr.mxu0 0.0
    %79 = vmatpush1.msra.mxu0 0.0
    %80 = vmatprep.subr.mxu0 0.0
    %81 = vmatpush1.msra.mxu0 0.0
    %82 = vmatprep.subr.mxu0 0.0
    %83 = vmatpush1.msra.mxu0 0.0
    %84 = vmatprep.subr.mxu0 0.0
    %85 = vmatpush1.msra.mxu0 0.0
    %86 = vmatprep.subr.mxu0 0.0
    %87 = vmatpush1.msra.mxu0 0.0
    %88 = vmatprep.subr.mxu0 0.0
    %89 = vmatpush1.msra.mxu0 0.0
    %90 = vmatprep.subr.mxu0 0.0
    %91 = vmatpush1.msra.mxu0 0.0
    %92 = vmatprep.subr.mxu0 0.0
    %93 = vmatpush1.msra.mxu0 0.0
    %94 = vmatprep.subr.mxu0 0.0
    %95 = vmatpush1.msra.mxu0 0.0
    %96 = vmatprep.subr.mxu0 0.0
    %97 = vmatpush1.msra.mxu0 0.0
    %98 = vmatprep.subr.mxu0 0.0
    %99 = vmatpush1.msra.mxu0 0.0
    %100 = vmatprep.mubr.f32.mxu0 0.0
    %101 = vmatmul.mubr.f32.gmra.mrb[0].mxu0 %v31
    %v102 = vpop.f32.mrb[0].mxu0
    %v103 = vadd.f32 0.0, %v102
    %v104 = vpop.f32.mrb[0].mxu0
    %105 = vmatprep.mubr.f32.mxu0 0.0
    %106 = vmatmul.mubr.f32.gmra.mrb[0].mxu0 %v34
    %v107 = vpop.f32.mrb[0].mxu0
    %v108 = vadd.f32 0.0, %v107
    %v109 = vpop.f32.mrb[0].mxu0
    %110 = vdwg.mxu0
    %vm111 = vcmask 31744
    %v112 = vsel %vm111, %v103, -inf
    %113 = vmax.xlane.f32.xlu0 %v112
    %v114 = vpop.xlane.xlu0 %113
    %v115 = vsel %vm111, %v108, -inf
    %116 = vmax.xlane.f32.xlu0 %v115
    %v117 = vpop.xlane.xlu0 %116
    %v118 = vsub.f32 %v103, %v114
    %v119 = vsub.f32 %v108, %v117
    %v120 = vmul.f32 %v118, 1.442695
    %v121 = vpow.pop %v120
    %v122 = vmul.f32 %v119, 1.442695
    %v123 = vpow.pop %v122
    %v124 = vsel %vm111, %v121, 0.0
    %125 = vadd.xlane.f32.xlu0 %v124
    %v126 = vpop.xlane.xlu0 %125
    %v127 = vsel %vm111, %v123, 0.0
    %128 = vadd.xlane.f32.xlu0 %v127
    %v129 = vpop.xlane.xlu0 %128
    %v130 = vrcp.pop %v126
    %v131 = vmul.f32 %v121, %v130
    %v132 = vrcp.pop %v129
    %v133 = vmul.f32 %v123, %v132
    %v134 = vlaneseq
    %v135 = vand.u32 %v134, 127
    %v136 = vsel %vm111, %v131, -inf
    %137 = vmax.xlane.f32.xlu0 %v136
    %v138 = vpop.xlane.xlu0 %137
    %v139 = vsel %vm111, %v133, -inf
    %140 = vmax.xlane.f32.xlu0 %v139
    %v141 = vpop.xlane.xlu0 %140
    %vm142 = vcmp.ge.f32.partialorder %v131, %v138
    %vm143 = vcmp.ge.f32.partialorder %v133, %v141
    %v144 = vsel %vm142, %v135, 4
    %v145 = vsel %vm143, %v135, 4
    %v146 = vsel %vm111, %v144, 2147483647
    %v147 = vand.u32 %v146, 65535
    %v148 = vshra.s32 %v146, 16
    %v149 = vcvt.s32.f32 %v147
    %v150 = vcvt.s32.f32 %v148
    %151 = vmin.xlane.f32.xlu0 %v150
    %v152 = vpop.xlane.xlu0 %151
    %vm153 = vcmp.eq.f32.partialorder %v150, %v152
    %v154 = vsel %vm153, %v149, inf
    %155 = vmin.xlane.f32.xlu0 %v154
    %v156 = vpop.xlane.xlu0 %155
    %v157 = vcvt.f32.s32 %v156
    %v158 = vcvt.f32.s32 %v152
    %v159 = vshll.u32 %v158, 16
    %v160 = vadd.s32 %v159, %v157
    %v161 = vsel %vm111, %v145, 2147483647
    %v162 = vand.u32 %v161, 65535
    %v163 = vshra.s32 %v161, 16
    %v164 = vcvt.s32.f32 %v162
    %v165 = vcvt.s32.f32 %v163
    %166 = vmin.xlane.f32.xlu0 %v165
    %v167 = vpop.xlane.xlu0 %166
    %vm168 = vcmp.eq.f32.partialorder %v165, %v167
    %v169 = vsel %vm168, %v164, inf
    %170 = vmin.xlane.f32.xlu0 %v169
    %v171 = vpop.xlane.xlu0 %170
    %v172 = vcvt.f32.s32 %v171
    %v173 = vcvt.f32.s32 %v167
    %v174 = vshll.u32 %v173, 16
    %v175 = vadd.s32 %v174, %v172
    %vm176 = vcmp.eq.s32.totalorder %v135, %v160
    %vm177 = vcmp.eq.s32.totalorder %v135, %v175
    %v178 = vsel %vm176, -inf, %v131
    %v179 = vsel %vm177, -inf, %v133
    %v180 = vsel %vm111, %v178, -inf
    %181 = vmax.xlane.f32.xlu0 %v180
    %v182 = vpop.xlane.xlu0 %181
    %v183 = vsel %vm111, %v179, -inf
    %184 = vmax.xlane.f32.xlu0 %v183
    %v185 = vpop.xlane.xlu0 %184
    %vm186 = vcmp.ge.f32.partialorder %v178, %v182
    %vm187 = vcmp.ge.f32.partialorder %v179, %v185
    %v188 = vsel %vm186, %v135, 4
    %v189 = vsel %vm187, %v135, 4
    %v190 = vsel %vm111, %v188, 2147483647
    %v191 = vand.u32 %v190, 65535
    %v192 = vshra.s32 %v190, 16
    %v193 = vcvt.s32.f32 %v191
    %v194 = vcvt.s32.f32 %v192
    %195 = vmin.xlane.f32.xlu0 %v194
    %v196 = vpop.xlane.xlu0 %195
    %vm197 = vcmp.eq.f32.partialorder %v194, %v196
    %v198 = vsel %vm197, %v193, inf
    %199 = vmin.xlane.f32.xlu0 %v198
    %v200 = vpop.xlane.xlu0 %199
    %v201 = vcvt.f32.s32 %v200
    %v202 = vcvt.f32.s32 %v196
    %v203 = vshll.u32 %v202, 16
    %v204 = vadd.s32 %v203, %v201
    %v205 = vsel %vm111, %v189, 2147483647
    %v206 = vand.u32 %v205, 65535
    %v207 = vshra.s32 %v205, 16
    %v208 = vcvt.s32.f32 %v206
    %v209 = vcvt.s32.f32 %v207
    %210 = vmin.xlane.f32.xlu0 %v209
    %v211 = vpop.xlane.xlu0 %210
    %vm212 = vcmp.eq.f32.partialorder %v209, %v211
    %v213 = vsel %vm212, %v208, inf
    %214 = vmin.xlane.f32.xlu0 %v213
    %v215 = vpop.xlane.xlu0 %214
    %v216 = vcvt.f32.s32 %v215
    %v217 = vcvt.f32.s32 %v211
    %v218 = vshll.u32 %v217, 16
    %v219 = vadd.s32 %v218, %v216
    %vm220 = vcmp.eq.s32.totalorder %v135, %v204
    %vm221 = vcmp.eq.s32.totalorder %v135, %v219
    %vm222 = vmor %vm176, %vm220
    %vm223 = vmor %vm177, %vm221
    %v224 = vsel %vm222, %v131, 0.0
    %v225 = vsel %vm223, %v133, 0.0
    %v226 = vsel %vm111, %v224, 0.0
    %227 = vadd.xlane.f32.xlu0 %v226
    %v228 = vpop.xlane.xlu0 %227
    %v229 = vsel %vm111, %v225, 0.0
    %230 = vadd.xlane.f32.xlu0 %v229
    %v231 = vpop.xlane.xlu0 %230
    %v232 = vadd.f32 %v228, 1e-20
    %v233 = vadd.f32 %v231, 1e-20
    %v234 = vrcp.pop %v232
    %v235 = vrcp.pop %v233
    %v236 = vmul.f32 %v224, %v234
    %v237 = vmul.f32 %v225, %v235
    %v238 = vpack.c.bf16 %v20, %v19
    %v239 = vld [vmem:[%s2] sm:$0xff]
    %v240 = vld [vmem:[%s2 + $0x8] sm:$0xff]
    %v241 = vld [vmem:[%s2 + $0x10] sm:$0xff]
    %v242 = vld [vmem:[%s2 + $0x18] sm:$0xff]
    %v243 = vld [vmem:[%s2 + $0x20] sm:$0xff]
    %v244 = vld [vmem:[%s2 + $0x28] sm:$0xff]
    %v245 = vld [vmem:[%s2 + $0x30] sm:$0xff]
    %v246 = vld [vmem:[%s2 + $0x38] sm:$0xff]
    %v247 = vld [vmem:[%s2 + $0x40] sm:$0xff]
    %v248 = vld [vmem:[%s2 + $0x48] sm:$0xff]
    %v249 = vld [vmem:[%s2 + $0x50] sm:$0xff]
    %v250 = vld [vmem:[%s2 + $0x58] sm:$0xff]
    %v251 = vld [vmem:[%s2 + $0x60] sm:$0xff]
    %v252 = vld [vmem:[%s2 + $0x68] sm:$0xff]
    %v253 = vld [vmem:[%s2 + $0x70] sm:$0xff]
    %v254 = vld [vmem:[%s2 + $0x78] sm:$0xff]
    %v255 = vld [vmem:[%s2 + $0x80] sm:$0xff]
    %v256 = vld [vmem:[%s2 + $0x88] sm:$0xff]
    %v257 = vld [vmem:[%s2 + $0x90] sm:$0xff]
    %v258 = vld [vmem:[%s2 + $0x98] sm:$0xff]
    %v259 = vld [vmem:[%s2 + $0xa0] sm:$0xff]
    %v260 = vld [vmem:[%s2 + $0xa8] sm:$0xff]
    %v261 = vld [vmem:[%s2 + $0xb0] sm:$0xff]
    %v262 = vld [vmem:[%s2 + $0xb8] sm:$0xff]
    %v263 = vld [vmem:[%s2 + $0xc0] sm:$0xff]
    %v264 = vld [vmem:[%s2 + $0xc8] sm:$0xff]
    %v265 = vld [vmem:[%s2 + $0xd0] sm:$0xff]
    %v266 = vld [vmem:[%s2 + $0xd8] sm:$0xff]
    %v267 = vld [vmem:[%s2 + $0xe0] sm:$0xff]
    %v268 = vld [vmem:[%s2 + $0xe8] sm:$0xff]
    %v269 = vld [vmem:[%s2 + $0xf0] sm:$0xff]
    %v270 = vld [vmem:[%s2 + $0xf8] sm:$0xff]
    %v271 = vld [vmem:[%s2 + $0x100] sm:$0xff]
    %v272 = vld [vmem:[%s2 + $0x108] sm:$0xff]
    %v273 = vld [vmem:[%s2 + $0x110] sm:$0xff]
    %v274 = vld [vmem:[%s2 + $0x118] sm:$0xff]
    %v275 = vld [vmem:[%s2 + $0x120] sm:$0xff]
    %v276 = vld [vmem:[%s2 + $0x128] sm:$0xff]
    %v277 = vld [vmem:[%s2 + $0x130] sm:$0xff]
    %v278 = vld [vmem:[%s2 + $0x138] sm:$0xff]
    %v319 = vunpack.c.l.b16 %v239
    %v320 = vunpack.c.h.b16 %v239
    %v321 = vunpack.c.l.b16 %v240
    %v322 = vunpack.c.h.b16 %v240
    %v323 = vunpack.c.l.b16 %v241
    %v324 = vunpack.c.h.b16 %v241
    %v325 = vunpack.c.l.b16 %v242
    %v326 = vunpack.c.h.b16 %v242
    %v327 = vunpack.c.l.b16 %v243
    %v328 = vunpack.c.h.b16 %v243
    %v329 = vunpack.c.l.b16 %v244
    %v330 = vunpack.c.h.b16 %v244
    %v331 = vunpack.c.l.b16 %v245
    %v332 = vunpack.c.h.b16 %v245
    %v333 = vunpack.c.l.b16 %v246
    %v334 = vunpack.c.h.b16 %v246
    %v335 = vunpack.c.l.b16 %v247
    %v336 = vunpack.c.h.b16 %v247
    %v337 = vunpack.c.l.b16 %v248
    %v338 = vunpack.c.h.b16 %v248
    %v339 = vunpack.c.l.b16 %v249
    %v340 = vunpack.c.h.b16 %v249
    %v341 = vunpack.c.l.b16 %v250
    %v342 = vunpack.c.h.b16 %v250
    %v343 = vunpack.c.l.b16 %v251
    %v344 = vunpack.c.h.b16 %v251
    %v345 = vunpack.c.l.b16 %v252
    %v346 = vunpack.c.h.b16 %v252
    %v347 = vunpack.c.l.b16 %v253
    %v348 = vunpack.c.h.b16 %v253
    %v349 = vunpack.c.l.b16 %v254
    %v350 = vunpack.c.h.b16 %v254
    %v351 = vunpack.c.l.b16 %v255
    %v352 = vunpack.c.h.b16 %v255
    %v353 = vunpack.c.l.b16 %v256
    %v354 = vunpack.c.h.b16 %v256
    %v355 = vunpack.c.l.b16 %v257
    %v356 = vunpack.c.h.b16 %v257
    %v357 = vunpack.c.l.b16 %v258
    %v358 = vunpack.c.h.b16 %v258
    %v359 = vunpack.c.l.b16 %v259
    %v360 = vunpack.c.h.b16 %v259
    %v361 = vunpack.c.l.b16 %v260
    %v362 = vunpack.c.h.b16 %v260
    %v363 = vunpack.c.l.b16 %v261
    %v364 = vunpack.c.h.b16 %v261
    %v365 = vunpack.c.l.b16 %v262
    %v366 = vunpack.c.h.b16 %v262
    %v367 = vunpack.c.l.b16 %v263
    %v368 = vunpack.c.h.b16 %v263
    %v369 = vunpack.c.l.b16 %v264
    %v370 = vunpack.c.h.b16 %v264
    %v371 = vunpack.c.l.b16 %v265
    %v372 = vunpack.c.h.b16 %v265
    %v373 = vunpack.c.l.b16 %v266
    %v374 = vunpack.c.h.b16 %v266
    %v375 = vunpack.c.l.b16 %v267
    %v376 = vunpack.c.h.b16 %v267
    %v377 = vunpack.c.l.b16 %v268
    %v378 = vunpack.c.h.b16 %v268
    %v379 = vunpack.c.l.b16 %v269
    %v380 = vunpack.c.h.b16 %v269
    %v381 = vunpack.c.l.b16 %v270
    %v382 = vunpack.c.h.b16 %v270
    %v383 = vunpack.c.l.b16 %v271
    %v384 = vunpack.c.h.b16 %v271
    %v385 = vunpack.c.l.b16 %v272
    %v386 = vunpack.c.h.b16 %v272
    %v387 = vunpack.c.l.b16 %v273
    %v388 = vunpack.c.h.b16 %v273
    %v389 = vunpack.c.l.b16 %v274
    %v390 = vunpack.c.h.b16 %v274
    %v391 = vunpack.c.l.b16 %v275
    %v392 = vunpack.c.h.b16 %v275
    %v393 = vunpack.c.l.b16 %v276
    %v394 = vunpack.c.h.b16 %v276
    %v395 = vunpack.c.l.b16 %v277
    %v396 = vunpack.c.h.b16 %v277
    %v397 = vunpack.c.l.b16 %v278
    %v398 = vunpack.c.h.b16 %v278
    %v399 = vpack.c.b16 %v329, %v319
    %v400 = vpack.c.b16 %v330, %v320
    %v401 = vpack.c.b16 %v331, %v321
    %v402 = vpack.c.b16 %v332, %v322
    %v403 = vpack.c.b16 %v333, %v323
    %v404 = vpack.c.b16 %v334, %v324
    %v405 = vpack.c.b16 %v335, %v325
    %v406 = vpack.c.b16 %v336, %v326
    %v407 = vpack.c.b16 %v337, %v327
    %v408 = vpack.c.b16 %v338, %v328
    %v409 = vpack.c.b16 %v349, %v339
    %v410 = vpack.c.b16 %v350, %v340
    %v411 = vpack.c.b16 %v351, %v341
    %v412 = vpack.c.b16 %v352, %v342
    %v413 = vpack.c.b16 %v353, %v343
    %v414 = vpack.c.b16 %v354, %v344
    %v415 = vpack.c.b16 %v355, %v345
    %v416 = vpack.c.b16 %v356, %v346
    %v417 = vpack.c.b16 %v357, %v347
    %v418 = vpack.c.b16 %v358, %v348
    %v419 = vpack.c.b16 %v369, %v359
    %v420 = vpack.c.b16 %v370, %v360
    %v421 = vpack.c.b16 %v371, %v361
    %v422 = vpack.c.b16 %v372, %v362
    %v423 = vpack.c.b16 %v373, %v363
    %v424 = vpack.c.b16 %v374, %v364
    %v425 = vpack.c.b16 %v375, %v365
    %v426 = vpack.c.b16 %v376, %v366
    %v427 = vpack.c.b16 %v377, %v367
    %v428 = vpack.c.b16 %v378, %v368
    %v429 = vpack.c.b16 %v389, %v379
    %v430 = vpack.c.b16 %v390, %v380
    %v431 = vpack.c.b16 %v391, %v381
    %v432 = vpack.c.b16 %v392, %v382
    %v433 = vpack.c.b16 %v393, %v383
    %v434 = vpack.c.b16 %v394, %v384
    %v435 = vpack.c.b16 %v395, %v385
    %v436 = vpack.c.b16 %v396, %v386
    %v437 = vpack.c.b16 %v397, %v387
    %v438 = vpack.c.b16 %v398, %v388
    %v480 = vsel %vm29, %v238, 0
    %482 = vmatprep.subr.bf16.mxu0 %v400
    %483 = vmatpush1.bf16.msra.mxu0 %v399
    %484 = vmatprep.subr.bf16.mxu0 %v410
    %485 = vmatpush1.bf16.msra.mxu0 %v409
    %486 = vmatprep.subr.bf16.mxu0 %v420
    %487 = vmatpush1.bf16.msra.mxu0 %v419
    %488 = vmatprep.subr.bf16.mxu0 %v430
    %489 = vmatpush1.bf16.msra.mxu0 %v429
    %490 = vmatprep.subr.bf16.mxu0 0
    %491 = vmatpush1.bf16.msra.mxu0 0
    %492 = vmatprep.subr.bf16.mxu0 0
    %493 = vmatpush1.bf16.msra.mxu0 0
    %494 = vmatprep.subr.bf16.mxu0 0
    %495 = vmatpush1.bf16.msra.mxu0 0
    %496 = vmatprep.subr.bf16.mxu0 0
    %497 = vmatpush1.bf16.msra.mxu0 0
    %498 = vmatprep.subr.bf16.mxu0 0
    %499 = vmatpush1.bf16.msra.mxu0 0
    %500 = vmatprep.subr.bf16.mxu0 0
    %501 = vmatpush1.bf16.msra.mxu0 0
    %502 = vmatprep.subr.bf16.mxu0 0
    %503 = vmatpush1.bf16.msra.mxu0 0
    %504 = vmatprep.subr.bf16.mxu0 0
    %505 = vmatpush1.bf16.msra.mxu0 0
    %506 = vmatprep.subr.bf16.mxu0 0
    %507 = vmatpush1.bf16.msra.mxu0 0
    %508 = vmatprep.subr.bf16.mxu0 0
    %509 = vmatpush1.bf16.msra.mxu0 0
    %510 = vmatprep.subr.bf16.mxu0 0
    %511 = vmatpush1.bf16.msra.mxu0 0
    %512 = vmatprep.subr.bf16.mxu0 0
    %513 = vmatpush1.bf16.msra.mxu0 0
    %514 = vmatprep.mubr.bf16.mxu0 0
    %515 = vmatmul.mubr.bf16.gmra.mrb[0].mxu0 %v480
    %v516 = vpop.f32.mrb[0].mxu0
    %v517 = vadd.f32 0.0, %v516
    %v518 = vpop.f32.mrb[0].mxu0
    %v519 = vadd.f32 0.0, %v518
    %v520 = vpop.f32.mrb[0].mxu0
    %v521 = vadd.f32 0.0, %v520
    %v522 = vpop.f32.mrb[0].mxu0
    %v523 = vadd.f32 0.0, %v522
    %524 = vdwg.mxu0
    %525 = vmatprep.subr.bf16.mxu0 %v402
    %526 = vmatpush1.bf16.msra.mxu0 %v401
    %527 = vmatprep.subr.bf16.mxu0 %v412
    %528 = vmatpush1.bf16.msra.mxu0 %v411
    %529 = vmatprep.subr.bf16.mxu0 %v422
    %530 = vmatpush1.bf16.msra.mxu0 %v421
    %531 = vmatprep.subr.bf16.mxu0 %v432
    %532 = vmatpush1.bf16.msra.mxu0 %v431
    %533 = vmatprep.subr.bf16.mxu0 0
    %534 = vmatpush1.bf16.msra.mxu0 0
    %535 = vmatprep.subr.bf16.mxu0 0
    %536 = vmatpush1.bf16.msra.mxu0 0
    %537 = vmatprep.subr.bf16.mxu0 0
    %538 = vmatpush1.bf16.msra.mxu0 0
    %539 = vmatprep.subr.bf16.mxu0 0
    %540 = vmatpush1.bf16.msra.mxu0 0
    %541 = vmatprep.subr.bf16.mxu0 0
    %542 = vmatpush1.bf16.msra.mxu0 0
    %543 = vmatprep.subr.bf16.mxu0 0
    %544 = vmatpush1.bf16.msra.mxu0 0
    %545 = vmatprep.subr.bf16.mxu0 0
    %546 = vmatpush1.bf16.msra.mxu0 0
    %547 = vmatprep.subr.bf16.mxu0 0
    %548 = vmatpush1.bf16.msra.mxu0 0
    %549 = vmatprep.subr.bf16.mxu0 0
    %550 = vmatpush1.bf16.msra.mxu0 0
    %551 = vmatprep.subr.bf16.mxu0 0
    %552 = vmatpush1.bf16.msra.mxu0 0
    %553 = vmatprep.subr.bf16.mxu0 0
    %554 = vmatpush1.bf16.msra.mxu0 0
    %555 = vmatprep.subr.bf16.mxu0 0
    %556 = vmatpush1.bf16.msra.mxu0 0
    %557 = vmatprep.mubr.bf16.mxu0 0
    %558 = vmatmul.mubr.bf16.gmra.mrb[0].mxu0 %v480
    %v559 = vpop.f32.mrb[0].mxu0
    %v560 = vadd.f32 0.0, %v559
    %v561 = vpop.f32.mrb[0].mxu0
    %v562 = vadd.f32 0.0, %v561
    %v563 = vpop.f32.mrb[0].mxu0
    %v564 = vadd.f32 0.0, %v563
    %v565 = vpop.f32.mrb[0].mxu0
    %v566 = vadd.f32 0.0, %v565
    %567 = vdwg.mxu0
    %568 = vmatprep.subr.bf16.mxu0 %v404
    %569 = vmatpush1.bf16.msra.mxu0 %v403
    %570 = vmatprep.subr.bf16.mxu0 %v414
    %571 = vmatpush1.bf16.msra.mxu0 %v413
    %572 = vmatprep.subr.bf16.mxu0 %v424
    %573 = vmatpush1.bf16.msra.mxu0 %v423
    %574 = vmatprep.subr.bf16.mxu0 %v434
    %575 = vmatpush1.bf16.msra.mxu0 %v433
    %576 = vmatprep.subr.bf16.mxu0 0
    %577 = vmatpush1.bf16.msra.mxu0 0
    %578 = vmatprep.subr.bf16.mxu0 0
    %579 = vmatpush1.bf16.msra.mxu0 0
    %580 = vmatprep.subr.bf16.mxu0 0
    %581 = vmatpush1.bf16.msra.mxu0 0
    %582 = vmatprep.subr.bf16.mxu0 0
    %583 = vmatpush1.bf16.msra.mxu0 0
    %584 = vmatprep.subr.bf16.mxu0 0
    %585 = vmatpush1.bf16.msra.mxu0 0
    %586 = vmatprep.subr.bf16.mxu0 0
    %587 = vmatpush1.bf16.msra.mxu0 0
    %588 = vmatprep.subr.bf16.mxu0 0
    %589 = vmatpush1.bf16.msra.mxu0 0
    %590 = vmatprep.subr.bf16.mxu0 0
    %591 = vmatpush1.bf16.msra.mxu0 0
    %592 = vmatprep.subr.bf16.mxu0 0
    %593 = vmatpush1.bf16.msra.mxu0 0
    %594 = vmatprep.subr.bf16.mxu0 0
    %595 = vmatpush1.bf16.msra.mxu0 0
    %596 = vmatprep.subr.bf16.mxu0 0
    %597 = vmatpush1.bf16.msra.mxu0 0
    %598 = vmatprep.subr.bf16.mxu0 0
    %599 = vmatpush1.bf16.msra.mxu0 0
    %600 = vmatprep.mubr.bf16.mxu0 0
    %601 = vmatmul.mubr.bf16.gmra.mrb[0].mxu0 %v480
    %v602 = vpop.f32.mrb[0].mxu0
    %v603 = vadd.f32 0.0, %v602
    %v604 = vpop.f32.mrb[0].mxu0
    %v605 = vadd.f32 0.0, %v604
    %v606 = vpop.f32.mrb[0].mxu0
    %v607 = vadd.f32 0.0, %v606
    %v608 = vpop.f32.mrb[0].mxu0
    %v609 = vadd.f32 0.0, %v608
    %610 = vdwg.mxu0
    %611 = vmatprep.subr.bf16.mxu0 %v406
    %612 = vmatpush1.bf16.msra.mxu0 %v405
    %613 = vmatprep.subr.bf16.mxu0 %v416
    %614 = vmatpush1.bf16.msra.mxu0 %v415
    %615 = vmatprep.subr.bf16.mxu0 %v426
    %616 = vmatpush1.bf16.msra.mxu0 %v425
    %617 = vmatprep.subr.bf16.mxu0 %v436
    %618 = vmatpush1.bf16.msra.mxu0 %v435
    %619 = vmatprep.subr.bf16.mxu0 0
    %620 = vmatpush1.bf16.msra.mxu0 0
    %621 = vmatprep.subr.bf16.mxu0 0
    %622 = vmatpush1.bf16.msra.mxu0 0
    %623 = vmatprep.subr.bf16.mxu0 0
    %624 = vmatpush1.bf16.msra.mxu0 0
    %625 = vmatprep.subr.bf16.mxu0 0
    %626 = vmatpush1.bf16.msra.mxu0 0
    %627 = vmatprep.subr.bf16.mxu0 0
    %628 = vmatpush1.bf16.msra.mxu0 0
    %629 = vmatprep.subr.bf16.mxu0 0
    %630 = vmatpush1.bf16.msra.mxu0 0
    %631 = vmatprep.subr.bf16.mxu0 0
    %632 = vmatpush1.bf16.msra.mxu0 0
    %633 = vmatprep.subr.bf16.mxu0 0
    %634 = vmatpush1.bf16.msra.mxu0 0
    %635 = vmatprep.subr.bf16.mxu0 0
    %636 = vmatpush1.bf16.msra.mxu0 0
    %637 = vmatprep.subr.bf16.mxu0 0
    %638 = vmatpush1.bf16.msra.mxu0 0
    %639 = vmatprep.subr.bf16.mxu0 0
    %640 = vmatpush1.bf16.msra.mxu0 0
    %641 = vmatprep.subr.bf16.mxu0 0
    %642 = vmatpush1.bf16.msra.mxu0 0
    %643 = vmatprep.mubr.bf16.mxu0 0
    %644 = vmatmul.mubr.bf16.gmra.mrb[0].mxu0 %v480
    %v645 = vpop.f32.mrb[0].mxu0
    %v646 = vadd.f32 0.0, %v645
    %v647 = vpop.f32.mrb[0].mxu0
    %v648 = vadd.f32 0.0, %v647
    %v649 = vpop.f32.mrb[0].mxu0
    %v650 = vadd.f32 0.0, %v649
    %v651 = vpop.f32.mrb[0].mxu0
    %v652 = vadd.f32 0.0, %v651
    %653 = vdwg.mxu0
    %654 = vmatprep.subr.bf16.mxu0 %v408
    %655 = vmatpush1.bf16.msra.mxu0 %v407
    %656 = vmatprep.subr.bf16.mxu0 %v418
    %657 = vmatpush1.bf16.msra.mxu0 %v417
    %658 = vmatprep.subr.bf16.mxu0 %v428
    %659 = vmatpush1.bf16.msra.mxu0 %v427
    %660 = vmatprep.subr.bf16.mxu0 %v438
    %661 = vmatpush1.bf16.msra.mxu0 %v437
    %662 = vmatprep.subr.bf16.mxu0 0
    %663 = vmatpush1.bf16.msra.mxu0 0
    %664 = vmatprep.subr.bf16.mxu0 0
    %665 = vmatpush1.bf16.msra.mxu0 0
    %666 = vmatprep.subr.bf16.mxu0 0
    %667 = vmatpush1.bf16.msra.mxu0 0
    %668 = vmatprep.subr.bf16.mxu0 0
    %669 = vmatpush1.bf16.msra.mxu0 0
    %670 = vmatprep.subr.bf16.mxu0 0
    %671 = vmatpush1.bf16.msra.mxu0 0
    %672 = vmatprep.subr.bf16.mxu0 0
    %673 = vmatpush1.bf16.msra.mxu0 0
    %674 = vmatprep.subr.bf16.mxu0 0
    %675 = vmatpush1.bf16.msra.mxu0 0
    %676 = vmatprep.subr.bf16.mxu0 0
    %677 = vmatpush1.bf16.msra.mxu0 0
    %678 = vmatprep.subr.bf16.mxu0 0
    %679 = vmatpush1.bf16.msra.mxu0 0
    %680 = vmatprep.subr.bf16.mxu0 0
    %681 = vmatpush1.bf16.msra.mxu0 0
    %682 = vmatprep.subr.bf16.mxu0 0
    %683 = vmatpush1.bf16.msra.mxu0 0
    %684 = vmatprep.subr.bf16.mxu0 0
    %685 = vmatpush1.bf16.msra.mxu0 0
    %686 = vmatprep.mubr.bf16.mxu0 0
    %687 = vmatmul.mubr.bf16.gmra.mrb[0].mxu0 %v480
    %v688 = vpop.f32.mrb[0].mxu0
    %v689 = vadd.f32 0.0, %v688
    %v690 = vpop.f32.mrb[0].mxu0
    %v691 = vadd.f32 0.0, %v690
    %v692 = vpop.f32.mrb[0].mxu0
    %v693 = vadd.f32 0.0, %v692
    %v694 = vpop.f32.mrb[0].mxu0
    %v695 = vadd.f32 0.0, %v694
    %696 = vdwg.mxu0
    %v697 = vxor.u32 %v517, 2147483648
    %v698 = vxor.u32 %v519, 2147483648
    %v699 = vxor.u32 %v560, 2147483648
    %v700 = vxor.u32 %v562, 2147483648
    %v701 = vxor.u32 %v603, 2147483648
    %v702 = vxor.u32 %v521, 2147483648
    %v703 = vxor.u32 %v523, 2147483648
    %v704 = vxor.u32 %v564, 2147483648
    %v705 = vxor.u32 %v566, 2147483648
    %v706 = vxor.u32 %v607, 2147483648
    %v707 = vmul.f32 %v697, 1.442695
    %v708 = vpow.pop %v707
    %v709 = vmul.f32 %v698, 1.442695
    %v710 = vpow.pop %v709
    %v711 = vmul.f32 %v699, 1.442695
    %v712 = vpow.pop %v711
    %v713 = vmul.f32 %v700, 1.442695
    %v714 = vpow.pop %v713
    %v715 = vmul.f32 %v701, 1.442695
    %v716 = vpow.pop %v715
    %v717 = vmul.f32 %v702, 1.442695
    %v718 = vpow.pop %v717
    %v719 = vmul.f32 %v703, 1.442695
    %v720 = vpow.pop %v719
    %v721 = vmul.f32 %v704, 1.442695
    %v722 = vpow.pop %v721
    %v723 = vmul.f32 %v705, 1.442695
    %v724 = vpow.pop %v723
    %v725 = vmul.f32 %v706, 1.442695
    %v726 = vpow.pop %v725
    %v727 = vadd.f32 %v708, 1.0
    %v728 = vadd.f32 %v710, 1.0
    %v729 = vadd.f32 %v712, 1.0
    %v730 = vadd.f32 %v714, 1.0
    %v731 = vadd.f32 %v716, 1.0
    %v732 = vadd.f32 %v718, 1.0
    %v733 = vadd.f32 %v720, 1.0
    %v734 = vadd.f32 %v722, 1.0
    %v735 = vadd.f32 %v724, 1.0
    %v736 = vadd.f32 %v726, 1.0
    %v737 = vrcp.pop %v727
    %v738 = vmul.f32 1.0, %v737
    %v739 = vrcp.pop %v728
    %v740 = vmul.f32 1.0, %v739
    %v741 = vrcp.pop %v729
    %v742 = vmul.f32 1.0, %v741
    %v743 = vrcp.pop %v730
    %v744 = vmul.f32 1.0, %v743
    %v745 = vrcp.pop %v731
    %v746 = vmul.f32 1.0, %v745
    %v747 = vrcp.pop %v732
    %v748 = vmul.f32 1.0, %v747
    %v749 = vrcp.pop %v733
    %v750 = vmul.f32 1.0, %v749
    %v751 = vrcp.pop %v734
    %v752 = vmul.f32 1.0, %v751
    %v753 = vrcp.pop %v735
    %v754 = vmul.f32 1.0, %v753
    %v755 = vrcp.pop %v736
    %v756 = vmul.f32 1.0, %v755
    %v757 = vmul.f32 %v517, %v738
    %v758 = vmul.f32 %v519, %v740
    %v759 = vmul.f32 %v560, %v742
    %v760 = vmul.f32 %v562, %v744
    %v761 = vmul.f32 %v603, %v746
    %v762 = vmul.f32 %v521, %v748
    %v763 = vmul.f32 %v523, %v750
    %v764 = vmul.f32 %v564, %v752
    %v765 = vmul.f32 %v566, %v754
    %v766 = vmul.f32 %v607, %v756
    %v767 = vmul.f32 %v757, %v605
    %v768 = vmul.f32 %v758, %v646
    %v769 = vmul.f32 %v759, %v648
    %v770 = vmul.f32 %v760, %v689
    %v771 = vmul.f32 %v761, %v691
    %v772 = vmul.f32 %v762, %v609
    %v773 = vmul.f32 %v763, %v650
    %v774 = vmul.f32 %v764, %v652
    %v775 = vmul.f32 %v765, %v693
    %v776 = vmul.f32 %v766, %v695
    %778 = vset.pattern.permute.xlu0 0
    %779 = vperm.xlu0 %778, %v236
    %v780 = vpop.permute.xlu0 %779
    %783 = vset.pattern.permute.xlu0 0
    %784 = vperm.xlu0 %783, %v237
    %v785 = vpop.permute.xlu0 %784
    %v787 = vmul.f32 %v767, %v780
    %v788 = vmul.f32 %v772, %v785
    %789 = vset.pattern.permute.xlu0 1
    %790 = vperm.xlu0 %789, %v236
    %v791 = vpop.permute.xlu0 %790
    %793 = vset.pattern.permute.xlu0 1
    %794 = vperm.xlu0 %793, %v237
    %v795 = vpop.permute.xlu0 %794
    %v797 = vmul.f32 %v768, %v791
    %v798 = vmul.f32 %v773, %v795
    %799 = vset.pattern.permute.xlu0 2
    %800 = vperm.xlu0 %799, %v236
    %v801 = vpop.permute.xlu0 %800
    %803 = vset.pattern.permute.xlu0 2
    %804 = vperm.xlu0 %803, %v237
    %v805 = vpop.permute.xlu0 %804
    %v807 = vmul.f32 %v769, %v801
    %v808 = vmul.f32 %v774, %v805
    %809 = vset.pattern.permute.xlu0 3
    %810 = vperm.xlu0 %809, %v236
    %v811 = vpop.permute.xlu0 %810
    %813 = vset.pattern.permute.xlu0 3
    %814 = vperm.xlu0 %813, %v237
    %v815 = vpop.permute.xlu0 %814
    %v817 = vmul.f32 %v770, %v811
    %v818 = vmul.f32 %v775, %v815
    %v819 = vpack.c.bf16 %v788, %v787
    %v820 = vpack.c.bf16 %v798, %v797
    %v821 = vpack.c.bf16 %v808, %v807
    %v822 = vpack.c.bf16 %v818, %v817
    %v823 = vpack.c.bf16 %v776, %v771
    %v824 = vld [vmem:[%s3] sm:$0xf]
    %v825 = vld [vmem:[%s3 + $0x4] sm:$0xf]
    %v826 = vld [vmem:[%s3 + $0x8] sm:$0xf]
    %v827 = vld [vmem:[%s3 + $0xc] sm:$0xf]
    %v828 = vld [vmem:[%s3 + $0x10] sm:$0xf]
    %v829 = vld [vmem:[%s3 + $0x14] sm:$0xf]
    %v830 = vld [vmem:[%s3 + $0x18] sm:$0xf]
    %v831 = vld [vmem:[%s3 + $0x1c] sm:$0xf]
    %v832 = vld [vmem:[%s3 + $0x20] sm:$0xf]
    %v833 = vld [vmem:[%s3 + $0x24] sm:$0xf]
    %v834 = vld [vmem:[%s3 + $0x28] sm:$0xf]
    %v835 = vld [vmem:[%s3 + $0x2c] sm:$0xf]
    %v836 = vld [vmem:[%s3 + $0x30] sm:$0xf]
    %v837 = vld [vmem:[%s3 + $0x34] sm:$0xf]
    %v838 = vld [vmem:[%s3 + $0x38] sm:$0xf]
    %v839 = vld [vmem:[%s3 + $0x3c] sm:$0xf]
    %v840 = vld [vmem:[%s3 + $0x40] sm:$0xf]
    %v841 = vld [vmem:[%s3 + $0x44] sm:$0xf]
    %v842 = vld [vmem:[%s3 + $0x48] sm:$0xf]
    %v843 = vld [vmem:[%s3 + $0x4c] sm:$0xf]
    %v844 = vld [vmem:[%s3 + $0x50] sm:$0xf]
    %v845 = vld [vmem:[%s3 + $0x54] sm:$0xf]
    %v846 = vld [vmem:[%s3 + $0x58] sm:$0xf]
    %v847 = vld [vmem:[%s3 + $0x5c] sm:$0xf]
    %v848 = vld [vmem:[%s3 + $0x60] sm:$0xf]
    %v849 = vld [vmem:[%s3 + $0x64] sm:$0xf]
    %v850 = vld [vmem:[%s3 + $0x68] sm:$0xf]
    %v851 = vld [vmem:[%s3 + $0x6c] sm:$0xf]
    %v852 = vld [vmem:[%s3 + $0x70] sm:$0xf]
    %v853 = vld [vmem:[%s3 + $0x74] sm:$0xf]
    %v854 = vld [vmem:[%s3 + $0x78] sm:$0xf]
    %v855 = vld [vmem:[%s3 + $0x7c] sm:$0xf]
    %v856 = vld [vmem:[%s3 + $0x80] sm:$0xf]
    %v857 = vld [vmem:[%s3 + $0x84] sm:$0xf]
    %v858 = vld [vmem:[%s3 + $0x88] sm:$0xf]
    %v859 = vld [vmem:[%s3 + $0x8c] sm:$0xf]
    %v860 = vld [vmem:[%s3 + $0x90] sm:$0xf]
    %v861 = vld [vmem:[%s3 + $0x94] sm:$0xf]
    %v862 = vld [vmem:[%s3 + $0x98] sm:$0xf]
    %v863 = vld [vmem:[%s3 + $0x9c] sm:$0xf]
    %v864 = vld [vmem:[%s3 + $0xa0] sm:$0xf]
    %v865 = vld [vmem:[%s3 + $0xa4] sm:$0xf]
    %v866 = vld [vmem:[%s3 + $0xa8] sm:$0xf]
    %v867 = vld [vmem:[%s3 + $0xac] sm:$0xf]
    %v868 = vld [vmem:[%s3 + $0xb0] sm:$0xf]
    %v869 = vld [vmem:[%s3 + $0xb4] sm:$0xf]
    %v870 = vld [vmem:[%s3 + $0xb8] sm:$0xf]
    %v871 = vld [vmem:[%s3 + $0xbc] sm:$0xf]
    %v872 = vld [vmem:[%s3 + $0xc0] sm:$0xf]
    %v873 = vld [vmem:[%s3 + $0xc4] sm:$0xf]
    %v874 = vld [vmem:[%s3 + $0xc8] sm:$0xf]
    %v875 = vld [vmem:[%s3 + $0xcc] sm:$0xf]
    %v876 = vld [vmem:[%s3 + $0xd0] sm:$0xf]
    %v877 = vld [vmem:[%s3 + $0xd4] sm:$0xf]
    %v878 = vld [vmem:[%s3 + $0xd8] sm:$0xf]
    %v879 = vld [vmem:[%s3 + $0xdc] sm:$0xf]
    %v880 = vld [vmem:[%s3 + $0xe0] sm:$0xf]
    %v881 = vld [vmem:[%s3 + $0xe4] sm:$0xf]
    %v882 = vld [vmem:[%s3 + $0xe8] sm:$0xf]
    %v883 = vld [vmem:[%s3 + $0xec] sm:$0xf]
    %v884 = vld [vmem:[%s3 + $0xf0] sm:$0xf]
    %v885 = vld [vmem:[%s3 + $0xf4] sm:$0xf]
    %v886 = vld [vmem:[%s3 + $0xf8] sm:$0xf]
    %v887 = vld [vmem:[%s3 + $0xfc] sm:$0xf]
    %v888 = vld [vmem:[%s3 + $0x100] sm:$0xf]
    %v889 = vld [vmem:[%s3 + $0x104] sm:$0xf]
    %v890 = vld [vmem:[%s3 + $0x108] sm:$0xf]
    %v891 = vld [vmem:[%s3 + $0x10c] sm:$0xf]
    %v892 = vld [vmem:[%s3 + $0x110] sm:$0xf]
    %v893 = vld [vmem:[%s3 + $0x114] sm:$0xf]
    %v894 = vld [vmem:[%s3 + $0x118] sm:$0xf]
    %v895 = vld [vmem:[%s3 + $0x11c] sm:$0xf]
    %v896 = vld [vmem:[%s3 + $0x120] sm:$0xf]
    %v897 = vld [vmem:[%s3 + $0x124] sm:$0xf]
    %v898 = vld [vmem:[%s3 + $0x128] sm:$0xf]
    %v899 = vld [vmem:[%s3 + $0x12c] sm:$0xf]
    %v900 = vld [vmem:[%s3 + $0x130] sm:$0xf]
    %v901 = vld [vmem:[%s3 + $0x134] sm:$0xf]
    %v902 = vld [vmem:[%s3 + $0x138] sm:$0xf]
    %v903 = vld [vmem:[%s3 + $0x13c] sm:$0xf]
    %v984 = vunpack.c.l.b16 %v824
    %v985 = vunpack.c.l.b16 %v825
    %v986 = vunpack.c.l.b16 %v826
    %v987 = vunpack.c.l.b16 %v827
    %v988 = vunpack.c.l.b16 %v828
    %v989 = vunpack.c.l.b16 %v829
    %v990 = vunpack.c.l.b16 %v830
    %v991 = vunpack.c.l.b16 %v831
    %v992 = vunpack.c.l.b16 %v832
    %v993 = vunpack.c.l.b16 %v833
    %v994 = vunpack.c.l.b16 %v834
    %v995 = vunpack.c.l.b16 %v835
    %v996 = vunpack.c.l.b16 %v836
    %v997 = vunpack.c.l.b16 %v837
    %v998 = vunpack.c.l.b16 %v838
    %v999 = vunpack.c.l.b16 %v839
    %v1000 = vunpack.c.l.b16 %v840
    %v1001 = vunpack.c.l.b16 %v841
    %v1002 = vunpack.c.l.b16 %v842
    %v1003 = vunpack.c.l.b16 %v843
    %v1004 = vunpack.c.l.b16 %v844
    %v1005 = vunpack.c.l.b16 %v845
    %v1006 = vunpack.c.l.b16 %v846
    %v1007 = vunpack.c.l.b16 %v847
    %v1008 = vunpack.c.l.b16 %v848
    %v1009 = vunpack.c.l.b16 %v849
    %v1010 = vunpack.c.l.b16 %v850
    %v1011 = vunpack.c.l.b16 %v851
    %v1012 = vunpack.c.l.b16 %v852
    %v1013 = vunpack.c.l.b16 %v853
    %v1014 = vunpack.c.l.b16 %v854
    %v1015 = vunpack.c.l.b16 %v855
    %v1016 = vunpack.c.l.b16 %v856
    %v1017 = vunpack.c.l.b16 %v857
    %v1018 = vunpack.c.l.b16 %v858
    %v1019 = vunpack.c.l.b16 %v859
    %v1020 = vunpack.c.l.b16 %v860
    %v1021 = vunpack.c.l.b16 %v861
    %v1022 = vunpack.c.l.b16 %v862
    %v1023 = vunpack.c.l.b16 %v863
    %v1024 = vunpack.c.l.b16 %v864
    %v1025 = vunpack.c.l.b16 %v865
    %v1026 = vunpack.c.l.b16 %v866
    %v1027 = vunpack.c.l.b16 %v867
    %v1028 = vunpack.c.l.b16 %v868
    %v1029 = vunpack.c.l.b16 %v869
    %v1030 = vunpack.c.l.b16 %v870
    %v1031 = vunpack.c.l.b16 %v871
    %v1032 = vunpack.c.l.b16 %v872
    %v1033 = vunpack.c.l.b16 %v873
    %v1034 = vunpack.c.l.b16 %v874
    %v1035 = vunpack.c.l.b16 %v875
    %v1036 = vunpack.c.l.b16 %v876
    %v1037 = vunpack.c.l.b16 %v877
    %v1038 = vunpack.c.l.b16 %v878
    %v1039 = vunpack.c.l.b16 %v879
    %v1040 = vunpack.c.l.b16 %v880
    %v1041 = vunpack.c.l.b16 %v881
    %v1042 = vunpack.c.l.b16 %v882
    %v1043 = vunpack.c.l.b16 %v883
    %v1044 = vunpack.c.l.b16 %v884
    %v1045 = vunpack.c.l.b16 %v885
    %v1046 = vunpack.c.l.b16 %v886
    %v1047 = vunpack.c.l.b16 %v887
    %v1048 = vunpack.c.l.b16 %v888
    %v1049 = vunpack.c.l.b16 %v889
    %v1050 = vunpack.c.l.b16 %v890
    %v1051 = vunpack.c.l.b16 %v891
    %v1052 = vunpack.c.l.b16 %v892
    %v1053 = vunpack.c.l.b16 %v893
    %v1054 = vunpack.c.l.b16 %v894
    %v1055 = vunpack.c.l.b16 %v895
    %v1056 = vunpack.c.l.b16 %v896
    %v1057 = vunpack.c.l.b16 %v897
    %v1058 = vunpack.c.l.b16 %v898
    %v1059 = vunpack.c.l.b16 %v899
    %v1060 = vunpack.c.l.b16 %v900
    %v1061 = vunpack.c.l.b16 %v901
    %v1062 = vunpack.c.l.b16 %v902
    %v1063 = vunpack.c.l.b16 %v903
    %v1064 = vpack.c.b16 %v985, %v984
    %v1065 = vpack.c.b16 %v987, %v986
    %v1066 = vpack.c.b16 %v989, %v988
    %v1067 = vpack.c.b16 %v991, %v990
    %v1068 = vpack.c.b16 %v993, %v992
    %v1069 = vpack.c.b16 %v995, %v994
    %v1070 = vpack.c.b16 %v997, %v996
    %v1071 = vpack.c.b16 %v999, %v998
    %v1072 = vpack.c.b16 %v1001, %v1000
    %v1073 = vpack.c.b16 %v1003, %v1002
    %v1074 = vpack.c.b16 %v1005, %v1004
    %v1075 = vpack.c.b16 %v1007, %v1006
    %v1076 = vpack.c.b16 %v1009, %v1008
    %v1077 = vpack.c.b16 %v1011, %v1010
    %v1078 = vpack.c.b16 %v1013, %v1012
    %v1079 = vpack.c.b16 %v1015, %v1014
    %v1080 = vpack.c.b16 %v1017, %v1016
    %v1081 = vpack.c.b16 %v1019, %v1018
    %v1082 = vpack.c.b16 %v1021, %v1020
    %v1083 = vpack.c.b16 %v1023, %v1022
    %v1084 = vpack.c.b16 %v1025, %v1024
    %v1085 = vpack.c.b16 %v1027, %v1026
    %v1086 = vpack.c.b16 %v1029, %v1028
    %v1087 = vpack.c.b16 %v1031, %v1030
    %v1088 = vpack.c.b16 %v1033, %v1032
    %v1089 = vpack.c.b16 %v1035, %v1034
    %v1090 = vpack.c.b16 %v1037, %v1036
    %v1091 = vpack.c.b16 %v1039, %v1038
    %v1092 = vpack.c.b16 %v1041, %v1040
    %v1093 = vpack.c.b16 %v1043, %v1042
    %v1094 = vpack.c.b16 %v1045, %v1044
    %v1095 = vpack.c.b16 %v1047, %v1046
    %v1096 = vpack.c.b16 %v1049, %v1048
    %v1097 = vpack.c.b16 %v1051, %v1050
    %v1098 = vpack.c.b16 %v1053, %v1052
    %v1099 = vpack.c.b16 %v1055, %v1054
    %v1100 = vpack.c.b16 %v1057, %v1056
    %v1101 = vpack.c.b16 %v1059, %v1058
    %v1102 = vpack.c.b16 %v1061, %v1060
    %v1103 = vpack.c.b16 %v1063, %v1062
    %1144 = vmatprep.subr.bf16.mxu0 0
    %1145 = vmatpush1.bf16.msra.mxu0 %v1064
    %1146 = vmatprep.subr.bf16.mxu0 0
    %1147 = vmatpush1.bf16.msra.mxu0 %v1065
    %1148 = vmatprep.subr.bf16.mxu0 0
    %1149 = vmatpush1.bf16.msra.mxu0 %v1066
    %1150 = vmatprep.subr.bf16.mxu0 0
    %1151 = vmatpush1.bf16.msra.mxu0 %v1067
    %1152 = vmatprep.subr.bf16.mxu0 0
    %1153 = vmatpush1.bf16.msra.mxu0 %v1068
    %1154 = vmatprep.subr.bf16.mxu0 0
    %1155 = vmatpush1.bf16.msra.mxu0 %v1069
    %1156 = vmatprep.subr.bf16.mxu0 0
    %1157 = vmatpush1.bf16.msra.mxu0 %v1070
    %1158 = vmatprep.subr.bf16.mxu0 0
    %1159 = vmatpush1.bf16.msra.mxu0 %v1071
    %1160 = vmatprep.subr.bf16.mxu0 0
    %1161 = vmatpush1.bf16.msra.mxu0 %v1072
    %1162 = vmatprep.subr.bf16.mxu0 0
    %1163 = vmatpush1.bf16.msra.mxu0 %v1073
    %1164 = vmatprep.subr.bf16.mxu0 0
    %1165 = vmatpush1.bf16.msra.mxu0 %v1074
    %1166 = vmatprep.subr.bf16.mxu0 0
    %1167 = vmatpush1.bf16.msra.mxu0 %v1075
    %1168 = vmatprep.subr.bf16.mxu0 0
    %1169 = vmatpush1.bf16.msra.mxu0 %v1076
    %1170 = vmatprep.subr.bf16.mxu0 0
    %1171 = vmatpush1.bf16.msra.mxu0 %v1077
    %1172 = vmatprep.subr.bf16.mxu0 0
    %1173 = vmatpush1.bf16.msra.mxu0 %v1078
    %1174 = vmatprep.subr.bf16.mxu0 0
    %1175 = vmatpush1.bf16.msra.mxu0 %v1079
    %1176 = vmatprep.mubr.bf16.mxu0 %v820
    %1177 = vmatmul.mubr.bf16.gmra.mrb[0].mxu0 %v819
    %v1178 = vpop.f32.mrb[0].mxu0
    %v1179 = vadd.f32 0.0, %v1178
    %v1180 = vpop.f32.mrb[0].mxu0
    %v1181 = vpop.f32.mrb[0].mxu0
    %v1182 = vadd.f32 0.0, %v1181
    %v1183 = vpop.f32.mrb[0].mxu0
    %1184 = vdwg.mxu0
    %1185 = vmatprep.subr.bf16.mxu0 0
    %1186 = vmatpush1.bf16.msra.mxu0 %v1080
    %1187 = vmatprep.subr.bf16.mxu0 0
    %1188 = vmatpush1.bf16.msra.mxu0 %v1081
    %1189 = vmatprep.subr.bf16.mxu0 0
    %1190 = vmatpush1.bf16.msra.mxu0 %v1082
    %1191 = vmatprep.subr.bf16.mxu0 0
    %1192 = vmatpush1.bf16.msra.mxu0 %v1083
    %1193 = vmatprep.subr.bf16.mxu0 0
    %1194 = vmatpush1.bf16.msra.mxu0 %v1084
    %1195 = vmatprep.subr.bf16.mxu0 0
    %1196 = vmatpush1.bf16.msra.mxu0 %v1085
    %1197 = vmatprep.subr.bf16.mxu0 0
    %1198 = vmatpush1.bf16.msra.mxu0 %v1086
    %1199 = vmatprep.subr.bf16.mxu0 0
    %1200 = vmatpush1.bf16.msra.mxu0 %v1087
    %1201 = vmatprep.subr.bf16.mxu0 0
    %1202 = vmatpush1.bf16.msra.mxu0 %v1088
    %1203 = vmatprep.subr.bf16.mxu0 0
    %1204 = vmatpush1.bf16.msra.mxu0 %v1089
    %1205 = vmatprep.subr.bf16.mxu0 0
    %1206 = vmatpush1.bf16.msra.mxu0 %v1090
    %1207 = vmatprep.subr.bf16.mxu0 0
    %1208 = vmatpush1.bf16.msra.mxu0 %v1091
    %1209 = vmatprep.subr.bf16.mxu0 0
    %1210 = vmatpush1.bf16.msra.mxu0 %v1092
    %1211 = vmatprep.subr.bf16.mxu0 0
    %1212 = vmatpush1.bf16.msra.mxu0 %v1093
    %1213 = vmatprep.subr.bf16.mxu0 0
    %1214 = vmatpush1.bf16.msra.mxu0 %v1094
    %1215 = vmatprep.subr.bf16.mxu0 0
    %1216 = vmatpush1.bf16.msra.mxu0 %v1095
    %1217 = vmatprep.mubr.bf16.mxu0 %v822
    %1218 = vmatmul.mubr.bf16.gmra.mrb[0].mxu0 %v821
    %v1219 = vpop.f32.mrb[0].mxu0
    %v1220 = vadd.f32 %v1179, %v1219
    %v1221 = vpop.f32.mrb[0].mxu0
    %v1222 = vpop.f32.mrb[0].mxu0
    %v1223 = vadd.f32 %v1182, %v1222
    %v1224 = vpop.f32.mrb[0].mxu0
    %1225 = vdwg.mxu0
    %1226 = vmatprep.subr.bf16.mxu0 0
    %1227 = vmatpush1.bf16.msra.mxu0 %v1096
    %1228 = vmatprep.subr.bf16.mxu0 0
    %1229 = vmatpush1.bf16.msra.mxu0 %v1097
    %1230 = vmatprep.subr.bf16.mxu0 0
    %1231 = vmatpush1.bf16.msra.mxu0 %v1098
    %1232 = vmatprep.subr.bf16.mxu0 0
    %1233 = vmatpush1.bf16.msra.mxu0 %v1099
    %1234 = vmatprep.subr.bf16.mxu0 0
    %1235 = vmatpush1.bf16.msra.mxu0 %v1100
    %1236 = vmatprep.subr.bf16.mxu0 0
    %1237 = vmatpush1.bf16.msra.mxu0 %v1101
    %1238 = vmatprep.subr.bf16.mxu0 0
    %1239 = vmatpush1.bf16.msra.mxu0 %v1102
    %1240 = vmatprep.subr.bf16.mxu0 0
    %1241 = vmatpush1.bf16.msra.mxu0 %v1103
    %1242 = vmatprep.subr.bf16.mxu0 0
    %1243 = vmatpush1.bf16.msra.mxu0 0
    %1244 = vmatprep.subr.bf16.mxu0 0
    %1245 = vmatpush1.bf16.msra.mxu0 0
    %1246 = vmatprep.subr.bf16.mxu0 0
    %1247 = vmatpush1.bf16.msra.mxu0 0
    %1248 = vmatprep.subr.bf16.mxu0 0
    %1249 = vmatpush1.bf16.msra.mxu0 0
    %1250 = vmatprep.subr.bf16.mxu0 0
    %1251 = vmatpush1.bf16.msra.mxu0 0
    %1252 = vmatprep.subr.bf16.mxu0 0
    %1253 = vmatpush1.bf16.msra.mxu0 0
    %1254 = vmatprep.subr.bf16.mxu0 0
    %1255 = vmatpush1.bf16.msra.mxu0 0
    %1256 = vmatprep.subr.bf16.mxu0 0
    %1257 = vmatpush1.bf16.msra.mxu0 0
    %1258 = vmatprep.mubr.bf16.mxu0 0
    %1259 = vmatmul.mubr.bf16.gmra.mrb[0].mxu0 %v823
    %v1260 = vpop.f32.mrb[0].mxu0
    %v1261 = vadd.f32 %v1220, %v1260
    %v1262 = vpop.f32.mrb[0].mxu0
    %v1263 = vpop.f32.mrb[0].mxu0
    %v1264 = vadd.f32 %v1223, %v1263
    %v1265 = vpop.f32.mrb[0].mxu0
    %1266 = vdwg.mxu0
    %1267 = vst.msk [vmem:[#allocation2] sm:$0xff] %vm29, %v1261
    %1268 = vst.msk [vmem:[#allocation2 + $0x8] sm:$0xff] %vm29, %v1264
    // Predicated region
    $region18: #{moe_feed_forward.1} parent=1 // pred_check
      _
    $region19: #{moe_feed_forward.1} parent=1 // pred_check_branch
      %1270 = sbr.rel (0) target = $region21
    $region20: #{moe_feed_forward.1} parent=1 // pred_region
      %s1272 = ssub.s32 256, 256
      %1273 = vsyncadd [#allocation3], %s1272
      %s1274 = sshll.u32 [#allocation2], 4
      %s1275 = int_to_ptr.vmem [resolvable:$true] %s1274
      %1280 = dma.vmem_to_hbm [thread:$0]  %s1275, 256, %s4, [#allocation3], 128, 128, 8
    $region21: #{moe_feed_forward.1} parent=1 // pred_fallthru
      _
    // Predicated region
    $region22: #{moe_feed_forward.1} parent=1 // pred_check
      _
    $region23: #{moe_feed_forward.1} parent=1 // pred_check_branch
      %1282 = sbr.rel (0) target = $region25
    $region24: #{moe_feed_forward.1} parent=1 // pred_region
      %1283 = dma.done [#allocation3], 256
    $region25: #{moe_feed_forward.1} parent=1 // pred_fallthru
      _
    %1284 = vsyncpa [#allocation3], 1

</llo_original>
